<compile_context>
chip_gen: v7x
topology: tpu7x:2x2x1
jax: 0.10.0
libtpu: 0.0.40
codegen_flags: <defaults>
</compile_context>

<pallas_src>
import jax
import jax.numpy as jnp
from jax.experimental import pallas as pl
from jax.experimental.pallas import tpu as pltpu

_LANES = 128
_SMALL_N_ELEMS = 1 << 16             # below this, plain XLA reduce is strictly faster
_DEFAULT_MAX_BLOCK_BYTES = 8 << 20   # 8 MiB input block -> 16 MiB double-buffered
_VMEM_LIMIT_BYTES = 32 << 20         # safe on v5e/v6e (128 MiB phys) and v7x (64 MiB phys)


def _tile_sum_kernel(x_ref, o_ref):
    """Per-tile partial sum.

    x_ref : (tile_rows, width) input tile in VMEM, native dtype.
    o_ref : (1, 1, 1) f32 partial sum. Each grid step writes its own output
            block, so the grid axis can be 'parallel' (megacore-safe on v7x).
    """
    s = jnp.sum(x_ref[...].astype(jnp.float32))
    o_ref[...] = jnp.broadcast_to(s, o_ref.shape)


def _pallas_sum_2d(x2d, max_block_bytes):
    """Sum a lane-dense (rows, width) array with a streaming Pallas reduce."""
    rows, width = x2d.shape
    itemsize = jnp.dtype(x2d.dtype).itemsize

    # Largest row tile (multiple of 8) whose block fits the byte budget.
    cap_rows = max(8, (max_block_bytes // (width * itemsize)) // 8 * 8)

    if rows <= cap_rows:
        tile_rows = rows                       # single full-extent block (always legal)
    else:
        # Prefer an exact divisor in [cap/2, cap] so blocks stay large.
        tile_rows = None
        lo = max(cap_rows // 2, 8)
        for cand in range(cap_rows, lo - 1, -8):
            if rows % cand == 0:
                tile_rows = cand
                break
        if tile_rows is None:
            # Zero-pad rows up to a tile multiple (zeros don't change the sum)
            # rather than tiny tiles or one giant unpipelined block.
            tile_rows = cap_rows
            padded = ((rows + tile_rows - 1) // tile_rows) * tile_rows
            x2d = jnp.pad(x2d, ((0, padded - rows), (0, 0)))
            rows = padded

    grid = rows // tile_rows

    partials = pl.pallas_call(
        _tile_sum_kernel,
        out_shape=jax.ShapeDtypeStruct((grid, 1, 1), jnp.float32),
        grid_spec=pltpu.PrefetchScalarGridSpec(
            num_scalar_prefetch=0,
            grid=(grid,),
            in_specs=[pl.BlockSpec((tile_rows, width), lambda i: (i, 0))],
            out_specs=pl.BlockSpec((1, 1, 1), lambda i: (i, 0, 0)),
        ),
        compiler_params=pltpu.CompilerParams(
            dimension_semantics=("parallel",),      # per-tile outputs -> megacore-safe
            vmem_limit_bytes=_VMEM_LIMIT_BYTES,
        ),
    )(x2d)
    return jnp.sum(partials)


def add4_and_sum(x, *, max_block_bytes=_DEFAULT_MAX_BLOCK_BYTES):
    """MyModel.forward: sum(x + 4), with the reduction done in Pallas.

    The +4 is folded algebraically: sum(x + 4) = sum(x) + 4 * x.size, so the
    kernel is a pure HBM-bandwidth-bound streaming reduce.
    """
    n = x.size  # static Python int
    four_n = jnp.float32(4.0 * n)

    if n == 0:
        return jnp.float32(0.0)

    # Small-input bypass: pallas_call fixed cost dominates below ~256 KiB.
    if n < _SMALL_N_ELEMS:
        return jnp.sum(x, dtype=jnp.float32) + four_n

    itemsize = jnp.dtype(x.dtype).itemsize
    total = jnp.float32(0.0)

    if (x.ndim >= 2
            and x.shape[-1] % _LANES == 0
            and 8 * x.shape[-1] * itemsize <= max_block_bytes
            and (n // x.shape[-1]) % 8 == 0):
        # Layout-preserving view: collapse leading dims only; trailing dim stays
        # the lane axis, so XLA inserts no relayout copy before the kernel.
        width = x.shape[-1]
        x2d = jnp.reshape(x, (-1, width))
        total = total + _pallas_sum_2d(x2d, max_block_bytes)
    else:
        # TODO(synk): flattening a non-128-aligned trailing dim may let XLA insert an
        # HBM relayout copy ahead of the kernel; only hit on awkward layouts.
        flat = jnp.reshape(x, (-1,))
        main = (n // (8 * _LANES)) * (8 * _LANES)   # rows stay a multiple of 8
        if main > 0:
            x2d = jnp.reshape(flat[:main], (main // _LANES, _LANES))
            total = total + _pallas_sum_2d(x2d, max_block_bytes)
        if main < n:
            # Ragged tail (< 1024 elements): sum in plain JAX.
            total = total + jnp.sum(flat[main:], dtype=jnp.float32)

    return total + four_n


if __name__ == "__main__":
    key = jax.random.PRNGKey(0)
    k1, k2, k3 = jax.random.split(key, 3)

    def ref_fn(v):
        return jnp.sum(v + 4.0)

    # 1) Spec shape of MyModel: small -> fused-XLA bypass path.
    x_small = jax.random.normal(k1, (2, 4, 16, 16), dtype=jnp.float32)
    out = add4_and_sum(x_small)
    jax.block_until_ready(out)
    assert jnp.allclose(out, ref_fn(x_small), rtol=1e-5, atol=1e-2), (out, ref_fn(x_small))

    # 2) 128-aligned trailing dim -> layout-preserving Pallas path (single large tile).
    x_big = jax.random.normal(k2, (6, 4, 128, 128), dtype=jnp.float32)
    out = add4_and_sum(x_big)
    jax.block_until_ready(out)
    assert jnp.allclose(out, ref_fn(x_big), rtol=1e-5, atol=1e-1), (out, ref_fn(x_big))

    # 3) Same input, smaller block budget -> multi-tile grid with per-tile partial
    #    outputs and a 'parallel' grid axis (megacore path on v7x).
    out = add4_and_sum(x_big, max_block_bytes=1 << 20)
    jax.block_until_ready(out)
    assert jnp.allclose(out, ref_fn(x_big), rtol=1e-5, atol=1e-1), (out, ref_fn(x_big))

    # 4) Non-128-aligned trailing dim, big enough for the kernel -> flatten fallback.
    x_odd = jax.random.normal(k3, (2, 4, 96, 96), dtype=jnp.float32)
    out = add4_and_sum(x_odd)
    jax.block_until_ready(out)
    assert jnp.allclose(out, ref_fn(x_odd), rtol=1e-5, atol=1e-1), (out, ref_fn(x_odd))

    print("KERNEL_OK")
</pallas_src>

<mosaic_0001>
module attributes {stable_mosaic.version = 11 : i64} {
  func.func @_tile_sum_kernel(%arg0: i32, %arg1: memref<3072x128xf32, #tpu.memory_space<vmem>>, %arg2: memref<1x1x1xf32, #tpu.memory_space<vmem>>) attributes {dimension_semantics = [#tpu.dimension_semantics<parallel>], iteration_bounds = array<i64: 1>, scalar_prefetch = 0 : i64, scratch_operands = 0 : i64, tpu.core_type = #tpu.core_type<tc>, window_params = [{transform_indices = @transform_0, window_bounds = array<i64: 3072, 128>}, {transform_indices = @transform_1, window_bounds = array<i64: 1, 1, 1>}]} {
    %c0 = arith.constant 0 : index
    %c0_0 = arith.constant 0 : index
    %0 = vector.load %arg1[%c0, %c0_0] : memref<3072x128xf32, #tpu.memory_space<vmem>>, vector<3072x128xf32>
    %1 = vector.shape_cast %0 : vector<3072x128xf32> to vector<1x3072x128xf32>
    %cst = arith.constant dense<0.000000e+00> : vector<1xf32>
    %2 = vector.multi_reduction <add>, %1, %cst [1, 2] : vector<1x3072x128xf32> to vector<1xf32>
    %3 = vector.shape_cast %2 : vector<1xf32> to vector<1x1x1xf32>
    %4 = vector.extract %3[0, 0, 0] : f32 from vector<1x1x1xf32>
    %5 = vector.broadcast %4 : f32 to vector<1x1x1xf32>
    %c0_1 = arith.constant 0 : index
    %c0_2 = arith.constant 0 : index
    %c0_3 = arith.constant 0 : index
    %6 = vector.load %arg2[%c0_1, %c0_2, %c0_3] : memref<1x1x1xf32, #tpu.memory_space<vmem>>, vector<1x1x1xf32>
    tpu.vector_store %arg2[%c0_1, %c0_2, %c0_3], %5 {strides = array<i32>} : memref<1x1x1xf32, #tpu.memory_space<vmem>>, vector<1x1x1xf32>,
    return
  }
  func.func @transform_0(%arg0: i32) -> (i32, i32) {
    %c0_i32 = arith.constant 0 : i32
    %c0_i32_0 = arith.constant 0 : i32
    return %arg0, %c0_i32 : i32, i32
  }
  func.func @transform_1(%arg0: i32) -> (i32, i32, i32) {
    %c0_i32 = arith.constant 0 : i32
    %c0_i32_0 = arith.constant 0 : i32
    %c0_i32_1 = arith.constant 0 : i32
    return %arg0, %c0_i32, %c0_i32_0 : i32, i32, i32
  }
}

</mosaic_0001>

<llo_original>
// kernel: tpu_custom_call.1
$region0: #{tpu_custom_call.1}
  #allocation0 [shape = 'u32[]', space=smem, size = 0x4, offset = 0x4, fixed_abs, tag = 'smem constant byte address 0x4 - core index']
  #allocation1 [shape = 'u32[144,128]{1,0:T(1,128)}', space=vmem, size = 0x12000, scoped, tag = 'internal scratch']
  %s0 = inlined_call_operand.hbm [shape: f32[3072,128], index: 0, kind: input, shape index: {}]
  %s1 = inlined_call_operand.hbm [shape: f32[1,1,1], index: 1, kind: output, shape index: {}]
  %s2 = sld [smem:[#allocation0]]
  $region18: #{tpu_custom_call.1} parent=0
    _
  %s4 = ssub.s32 1, %s2
  %s5 = scalar_select 0, %s4, %s2
  $region1: #{tpu_custom_call.1} parent=0
    #allocation2 [shape = 'u8[1572864]{0}', space=vmem, size = 0x180000, scoped, tag = 'input window, operand 0, single buffered']
    #allocation3 [shape = 's32[1]{0}', space=sflag, size = 0x4, scoped, tag = 'scoped memory for tpu_custom_call.1']
    #allocation4 [shape = 's32[1]{0}', space=sflag, size = 0x4, scoped, tag = 'scoped memory for tpu_custom_call.1']
    #allocation5 [shape = 'u8[512]{0}', space=vmem, size = 0x400, scoped, tag = 'output window, operand 0, single buffered']
    %6 = vsyncpa [#allocation3], 0
    %7 = vsyncpa [#allocation4], 0
    // Predicated region
    $region2: #{tpu_custom_call.1} parent=1 // pred_check
      _
    $region3: #{tpu_custom_call.1} parent=1 // pred_check_branch
      %9 = sbr.rel (0) target = $region5
    $region4: #{tpu_custom_call.1} parent=1 // pred_region
      %s11 = ssub.s32 49152, 49152
      %12 = vsyncadd [#allocation3], %s11
      %s13 = sshll.u32 [#allocation2], 4
      %s14 = int_to_ptr.vmem [resolvable:$true] %s13
      %19 = dma.hbm_to_vmem [thread:$0]  %s0, 49152, %s14, [#allocation3], 128, 128, 8
    $region5: #{tpu_custom_call.1} parent=1 // pred_fallthru
      _
    // Predicated region
    $region6: #{tpu_custom_call.1} parent=1 // pred_check
      _
    $region7: #{tpu_custom_call.1} parent=1 // pred_check_branch
      %21 = sbr.rel (0) target = $region9
    $region8: #{tpu_custom_call.1} parent=1 // pred_region
      %22 = dma.done [#allocation3], 49152
    $region9: #{tpu_custom_call.1} parent=1 // pred_fallthru
      _
    %v23 = vld [vmem:[#allocation2] sm:$0xff]
    %v24 = vld [vmem:[#allocation2 + $0x8] sm:$0xff]
    %v25 = vld [vmem:[#allocation2 + $0x10] sm:$0xff]
    %v26 = vld [vmem:[#allocation2 + $0x18] sm:$0xff]
    %v27 = vld [vmem:[#allocation2 + $0x20] sm:$0xff]
    %v28 = vld [vmem:[#allocation2 + $0x28] sm:$0xff]
    %v29 = vld [vmem:[#allocation2 + $0x30] sm:$0xff]
    %v30 = vld [vmem:[#allocation2 + $0x38] sm:$0xff]
    %v31 = vld [vmem:[#allocation2 + $0x40] sm:$0xff]
    %v32 = vld [vmem:[#allocation2 + $0x48] sm:$0xff]
    %v33 = vld [vmem:[#allocation2 + $0x50] sm:$0xff]
    %v34 = vld [vmem:[#allocation2 + $0x58] sm:$0xff]
    %v35 = vld [vmem:[#allocation2 + $0x60] sm:$0xff]
    %v36 = vld [vmem:[#allocation2 + $0x68] sm:$0xff]
    %v37 = vld [vmem:[#allocation2 + $0x70] sm:$0xff]
    %v38 = vld [vmem:[#allocation2 + $0x78] sm:$0xff]
    %v39 = vld [vmem:[#allocation2 + $0x80] sm:$0xff]
    %v40 = vld [vmem:[#allocation2 + $0x88] sm:$0xff]
    %v41 = vld [vmem:[#allocation2 + $0x90] sm:$0xff]
    %v42 = vld [vmem:[#allocation2 + $0x98] sm:$0xff]
    %v43 = vld [vmem:[#allocation2 + $0xa0] sm:$0xff]
    %v44 = vld [vmem:[#allocation2 + $0xa8] sm:$0xff]
    %v45 = vld [vmem:[#allocation2 + $0xb0] sm:$0xff]
    %v46 = vld [vmem:[#allocation2 + $0xb8] sm:$0xff]
    %v47 = vld [vmem:[#allocation2 + $0xc0] sm:$0xff]
    %v48 = vld [vmem:[#allocation2 + $0xc8] sm:$0xff]
    %v49 = vld [vmem:[#allocation2 + $0xd0] sm:$0xff]
    %v50 = vld [vmem:[#allocation2 + $0xd8] sm:$0xff]
    %v51 = vld [vmem:[#allocation2 + $0xe0] sm:$0xff]
    %v52 = vld [vmem:[#allocation2 + $0xe8] sm:$0xff]
    %v53 = vld [vmem:[#allocation2 + $0xf0] sm:$0xff]
    %v54 = vld [vmem:[#allocation2 + $0xf8] sm:$0xff]
    %v55 = vld [vmem:[#allocation2 + $0x100] sm:$0xff]
    %v56 = vld [vmem:[#allocation2 + $0x108] sm:$0xff]
    %v57 = vld [vmem:[#allocation2 + $0x110] sm:$0xff]
    %v58 = vld [vmem:[#allocation2 + $0x118] sm:$0xff]
    %v59 = vld [vmem:[#allocation2 + $0x120] sm:$0xff]
    %v60 = vld [vmem:[#allocation2 + $0x128] sm:$0xff]
    %v61 = vld [vmem:[#allocation2 + $0x130] sm:$0xff]
    %v62 = vld [vmem:[#allocation2 + $0x138] sm:$0xff]
    %v63 = vld [vmem:[#allocation2 + $0x140] sm:$0xff]
    %v64 = vld [vmem:[#allocation2 + $0x148] sm:$0xff]
    %v65 = vld [vmem:[#allocation2 + $0x150] sm:$0xff]
    %v66 = vld [vmem:[#allocation2 + $0x158] sm:$0xff]
    %v67 = vld [vmem:[#allocation2 + $0x160] sm:$0xff]
    %v68 = vld [vmem:[#allocation2 + $0x168] sm:$0xff]
    %v69 = vld [vmem:[#allocation2 + $0x170] sm:$0xff]
    %v70 = vld [vmem:[#allocation2 + $0x178] sm:$0xff]
    %v71 = vld [vmem:[#allocation2 + $0x180] sm:$0xff]
    %v72 = vld [vmem:[#allocation2 + $0x188] sm:$0xff]
    %v73 = vld [vmem:[#allocation2 + $0x190] sm:$0xff]
    %v74 = vld [vmem:[#allocation2 + $0x198] sm:$0xff]
    %v75 = vld [vmem:[#allocation2 + $0x1a0] sm:$0xff]
    %v76 = vld [vmem:[#allocation2 + $0x1a8] sm:$0xff]
    %v77 = vld [vmem:[#allocation2 + $0x1b0] sm:$0xff]
    %v78 = vld [vmem:[#allocation2 + $0x1b8] sm:$0xff]
    %v79 = vld [vmem:[#allocation2 + $0x1c0] sm:$0xff]
    %v80 = vld [vmem:[#allocation2 + $0x1c8] sm:$0xff]
    %v81 = vld [vmem:[#allocation2 + $0x1d0] sm:$0xff]
    %v82 = vld [vmem:[#allocation2 + $0x1d8] sm:$0xff]
    %v83 = vld [vmem:[#allocation2 + $0x1e0] sm:$0xff]
    %v84 = vld [vmem:[#allocation2 + $0x1e8] sm:$0xff]
    %v85 = vld [vmem:[#allocation2 + $0x1f0] sm:$0xff]
    %v86 = vld [vmem:[#allocation2 + $0x1f8] sm:$0xff]
    %v87 = vld [vmem:[#allocation2 + $0x200] sm:$0xff]
    %v88 = vld [vmem:[#allocation2 + $0x208] sm:$0xff]
    %v89 = vld [vmem:[#allocation2 + $0x210] sm:$0xff]
    %v90 = vld [vmem:[#allocation2 + $0x218] sm:$0xff]
    %v91 = vld [vmem:[#allocation2 + $0x220] sm:$0xff]
    %v92 = vld [vmem:[#allocation2 + $0x228] sm:$0xff]
    %v93 = vld [vmem:[#allocation2 + $0x230] sm:$0xff]
    %v94 = vld [vmem:[#allocation2 + $0x238] sm:$0xff]
    %v95 = vld [vmem:[#allocation2 + $0x240] sm:$0xff]
    %v96 = vld [vmem:[#allocation2 + $0x248] sm:$0xff]
    %v97 = vld [vmem:[#allocation2 + $0x250] sm:$0xff]
    %v98 = vld [vmem:[#allocation2 + $0x258] sm:$0xff]
    %v99 = vld [vmem:[#allocation2 + $0x260] sm:$0xff]
    %v100 = vld [vmem:[#allocation2 + $0x268] sm:$0xff]
    %v101 = vld [vmem:[#allocation2 + $0x270] sm:$0xff]
    %v102 = vld [vmem:[#allocation2 + $0x278] sm:$0xff]
    %v103 = vld [vmem:[#allocation2 + $0x280] sm:$0xff]
    %v104 = vld [vmem:[#allocation2 + $0x288] sm:$0xff]
    %v105 = vld [vmem:[#allocation2 + $0x290] sm:$0xff]
    %v106 = vld [vmem:[#allocation2 + $0x298] sm:$0xff]
    %v107 = vld [vmem:[#allocation2 + $0x2a0] sm:$0xff]
    %v108 = vld [vmem:[#allocation2 + $0x2a8] sm:$0xff]
    %v109 = vld [vmem:[#allocation2 + $0x2b0] sm:$0xff]
    %v110 = vld [vmem:[#allocation2 + $0x2b8] sm:$0xff]
    %v111 = vld [vmem:[#allocation2 + $0x2c0] sm:$0xff]
    %v112 = vld [vmem:[#allocation2 + $0x2c8] sm:$0xff]
    %v113 = vld [vmem:[#allocation2 + $0x2d0] sm:$0xff]
    %v114 = vld [vmem:[#allocation2 + $0x2d8] sm:$0xff]
    %v115 = vld [vmem:[#allocation2 + $0x2e0] sm:$0xff]
    %v116 = vld [vmem:[#allocation2 + $0x2e8] sm:$0xff]
    %v117 = vld [vmem:[#allocation2 + $0x2f0] sm:$0xff]
    %v118 = vld [vmem:[#allocation2 + $0x2f8] sm:$0xff]
    %v119 = vld [vmem:[#allocation2 + $0x300] sm:$0xff]
    %v120 = vld [vmem:[#allocation2 + $0x308] sm:$0xff]
    %v121 = vld [vmem:[#allocation2 + $0x310] sm:$0xff]
    %v122 = vld [vmem:[#allocation2 + $0x318] sm:$0xff]
    %v123 = vld [vmem:[#allocation2 + $0x320] sm:$0xff]
    %v124 = vld [vmem:[#allocation2 + $0x328] sm:$0xff]
    %v125 = vld [vmem:[#allocation2 + $0x330] sm:$0xff]
    %v126 = vld [vmem:[#allocation2 + $0x338] sm:$0xff]
    %v127 = vld [vmem:[#allocation2 + $0x340] sm:$0xff]
    %v128 = vld [vmem:[#allocation2 + $0x348] sm:$0xff]
    %v129 = vld [vmem:[#allocation2 + $0x350] sm:$0xff]
    %v130 = vld [vmem:[#allocation2 + $0x358] sm:$0xff]
    %v131 = vld [vmem:[#allocation2 + $0x360] sm:$0xff]
    %v132 = vld [vmem:[#allocation2 + $0x368] sm:$0xff]
    %v133 = vld [vmem:[#allocation2 + $0x370] sm:$0xff]
    %v134 = vld [vmem:[#allocation2 + $0x378] sm:$0xff]
    %v135 = vld [vmem:[#allocation2 + $0x380] sm:$0xff]
    %v136 = vld [vmem:[#allocation2 + $0x388] sm:$0xff]
    %v137 = vld [vmem:[#allocation2 + $0x390] sm:$0xff]
    %v138 = vld [vmem:[#allocation2 + $0x398] sm:$0xff]
    %v139 = vld [vmem:[#allocation2 + $0x3a0] sm:$0xff]
    %v140 = vld [vmem:[#allocation2 + $0x3a8] sm:$0xff]
    %v141 = vld [vmem:[#allocation2 + $0x3b0] sm:$0xff]
    %v142 = vld [vmem:[#allocation2 + $0x3b8] sm:$0xff]
    %v143 = vld [vmem:[#allocation2 + $0x3c0] sm:$0xff]
    %v144 = vld [vmem:[#allocation2 + $0x3c8] sm:$0xff]
    %v145 = vld [vmem:[#allocation2 + $0x3d0] sm:$0xff]
    %v146 = vld [vmem:[#allocation2 + $0x3d8] sm:$0xff]
    %v147 = vld [vmem:[#allocation2 + $0x3e0] sm:$0xff]
    %v148 = vld [vmem:[#allocation2 + $0x3e8] sm:$0xff]
    %v149 = vld [vmem:[#allocation2 + $0x3f0] sm:$0xff]
    %v150 = vld [vmem:[#allocation2 + $0x3f8] sm:$0xff]
    %v151 = vld [vmem:[#allocation2 + $0x400] sm:$0xff]
    %v152 = vld [vmem:[#allocation2 + $0x408] sm:$0xff]
    %v153 = vld [vmem:[#allocation2 + $0x410] sm:$0xff]
    %v154 = vld [vmem:[#allocation2 + $0x418] sm:$0xff]
    %v155 = vld [vmem:[#allocation2 + $0x420] sm:$0xff]
    %v156 = vld [vmem:[#allocation2 + $0x428] sm:$0xff]
    %v157 = vld [vmem:[#allocation2 + $0x430] sm:$0xff]
    %v158 = vld [vmem:[#allocation2 + $0x438] sm:$0xff]
    %v159 = vld [vmem:[#allocation2 + $0x440] sm:$0xff]
    %v160 = vld [vmem:[#allocation2 + $0x448] sm:$0xff]
    %v161 = vld [vmem:[#allocation2 + $0x450] sm:$0xff]
    %v162 = vld [vmem:[#allocation2 + $0x458] sm:$0xff]
    %v163 = vld [vmem:[#allocation2 + $0x460] sm:$0xff]
    %v164 = vld [vmem:[#allocation2 + $0x468] sm:$0xff]
    %v165 = vld [vmem:[#allocation2 + $0x470] sm:$0xff]
    %v166 = vld [vmem:[#allocation2 + $0x478] sm:$0xff]
    %v167 = vld [vmem:[#allocation2 + $0x480] sm:$0xff]
    %v168 = vld [vmem:[#allocation2 + $0x488] sm:$0xff]
    %v169 = vld [vmem:[#allocation2 + $0x490] sm:$0xff]
    %v170 = vld [vmem:[#allocation2 + $0x498] sm:$0xff]
    %v171 = vld [vmem:[#allocation2 + $0x4a0] sm:$0xff]
    %v172 = vld [vmem:[#allocation2 + $0x4a8] sm:$0xff]
    %v173 = vld [vmem:[#allocation2 + $0x4b0] sm:$0xff]
    %v174 = vld [vmem:[#allocation2 + $0x4b8] sm:$0xff]
    %v175 = vld [vmem:[#allocation2 + $0x4c0] sm:$0xff]
    %v176 = vld [vmem:[#allocation2 + $0x4c8] sm:$0xff]
    %v177 = vld [vmem:[#allocation2 + $0x4d0] sm:$0xff]
    %v178 = vld [vmem:[#allocation2 + $0x4d8] sm:$0xff]
    %v179 = vld [vmem:[#allocation2 + $0x4e0] sm:$0xff]
    %v180 = vld [vmem:[#allocation2 + $0x4e8] sm:$0xff]
    %v181 = vld [vmem:[#allocation2 + $0x4f0] sm:$0xff]
    %v182 = vld [vmem:[#allocation2 + $0x4f8] sm:$0xff]
    %v183 = vld [vmem:[#allocation2 + $0x500] sm:$0xff]
    %v184 = vld [vmem:[#allocation2 + $0x508] sm:$0xff]
    %v185 = vld [vmem:[#allocation2 + $0x510] sm:$0xff]
    %v186 = vld [vmem:[#allocation2 + $0x518] sm:$0xff]
    %v187 = vld [vmem:[#allocation2 + $0x520] sm:$0xff]
    %v188 = vld [vmem:[#allocation2 + $0x528] sm:$0xff]
    %v189 = vld [vmem:[#allocation2 + $0x530] sm:$0xff]
    %v190 = vld [vmem:[#allocation2 + $0x538] sm:$0xff]
    %v191 = vld [vmem:[#allocation2 + $0x540] sm:$0xff]
    %v192 = vld [vmem:[#allocation2 + $0x548] sm:$0xff]
    %v193 = vld [vmem:[#allocation2 + $0x550] sm:$0xff]
    %v194 = vld [vmem:[#allocation2 + $0x558] sm:$0xff]
    %v195 = vld [vmem:[#allocation2 + $0x560] sm:$0xff]
    %v196 = vld [vmem:[#allocation2 + $0x568] sm:$0xff]
    %v197 = vld [vmem:[#allocation2 + $0x570] sm:$0xff]
    %v198 = vld [vmem:[#allocation2 + $0x578] sm:$0xff]
    %v199 = vld [vmem:[#allocation2 + $0x580] sm:$0xff]
    %v200 = vld [vmem:[#allocation2 + $0x588] sm:$0xff]
    %v201 = vld [vmem:[#allocation2 + $0x590] sm:$0xff]
    %v202 = vld [vmem:[#allocation2 + $0x598] sm:$0xff]
    %v203 = vld [vmem:[#allocation2 + $0x5a0] sm:$0xff]
    %v204 = vld [vmem:[#allocation2 + $0x5a8] sm:$0xff]
    %v205 = vld [vmem:[#allocation2 + $0x5b0] sm:$0xff]
    %v206 = vld [vmem:[#allocation2 + $0x5b8] sm:$0xff]
    %v207 = vld [vmem:[#allocation2 + $0x5c0] sm:$0xff]
    %v208 = vld [vmem:[#allocation2 + $0x5c8] sm:$0xff]
    %v209 = vld [vmem:[#allocation2 + $0x5d0] sm:$0xff]
    %v210 = vld [vmem:[#allocation2 + $0x5d8] sm:$0xff]
    %v211 = vld [vmem:[#allocation2 + $0x5e0] sm:$0xff]
    %v212 = vld [vmem:[#allocation2 + $0x5e8] sm:$0xff]
    %v213 = vld [vmem:[#allocation2 + $0x5f0] sm:$0xff]
    %v214 = vld [vmem:[#allocation2 + $0x5f8] sm:$0xff]
    %v215 = vld [vmem:[#allocation2 + $0x600] sm:$0xff]
    %v216 = vld [vmem:[#allocation2 + $0x608] sm:$0xff]
    %v217 = vld [vmem:[#allocation2 + $0x610] sm:$0xff]
    %v218 = vld [vmem:[#allocation2 + $0x618] sm:$0xff]
    %v219 = vld [vmem:[#allocation2 + $0x620] sm:$0xff]
    %v220 = vld [vmem:[#allocation2 + $0x628] sm:$0xff]
    %v221 = vld [vmem:[#allocation2 + $0x630] sm:$0xff]
    %v222 = vld [vmem:[#allocation2 + $0x638] sm:$0xff]
    %v223 = vld [vmem:[#allocation2 + $0x640] sm:$0xff]
    %v224 = vld [vmem:[#allocation2 + $0x648] sm:$0xff]
    %v225 = vld [vmem:[#allocation2 + $0x650] sm:$0xff]
    %v226 = vld [vmem:[#allocation2 + $0x658] sm:$0xff]
    %v227 = vld [vmem:[#allocation2 + $0x660] sm:$0xff]
    %v228 = vld [vmem:[#allocation2 + $0x668] sm:$0xff]
    %v229 = vld [vmem:[#allocation2 + $0x670] sm:$0xff]
    %v230 = vld [vmem:[#allocation2 + $0x678] sm:$0xff]
    %v231 = vld [vmem:[#allocation2 + $0x680] sm:$0xff]
    %v232 = vld [vmem:[#allocation2 + $0x688] sm:$0xff]
    %v233 = vld [vmem:[#allocation2 + $0x690] sm:$0xff]
    %v234 = vld [vmem:[#allocation2 + $0x698] sm:$0xff]
    %v235 = vld [vmem:[#allocation2 + $0x6a0] sm:$0xff]
    %v236 = vld [vmem:[#allocation2 + $0x6a8] sm:$0xff]
    %v237 = vld [vmem:[#allocation2 + $0x6b0] sm:$0xff]
    %v238 = vld [vmem:[#allocation2 + $0x6b8] sm:$0xff]
    %v239 = vld [vmem:[#allocation2 + $0x6c0] sm:$0xff]
    %v240 = vld [vmem:[#allocation2 + $0x6c8] sm:$0xff]
    %v241 = vld [vmem:[#allocation2 + $0x6d0] sm:$0xff]
    %v242 = vld [vmem:[#allocation2 + $0x6d8] sm:$0xff]
    %v243 = vld [vmem:[#allocation2 + $0x6e0] sm:$0xff]
    %v244 = vld [vmem:[#allocation2 + $0x6e8] sm:$0xff]
    %v245 = vld [vmem:[#allocation2 + $0x6f0] sm:$0xff]
    %v246 = vld [vmem:[#allocation2 + $0x6f8] sm:$0xff]
    %v247 = vld [vmem:[#allocation2 + $0x700] sm:$0xff]
    %v248 = vld [vmem:[#allocation2 + $0x708] sm:$0xff]
    %v249 = vld [vmem:[#allocation2 + $0x710] sm:$0xff]
    %v250 = vld [vmem:[#allocation2 + $0x718] sm:$0xff]
    %v251 = vld [vmem:[#allocation2 + $0x720] sm:$0xff]
    %v252 = vld [vmem:[#allocation2 + $0x728] sm:$0xff]
    %v253 = vld [vmem:[#allocation2 + $0x730] sm:$0xff]
    %v254 = vld [vmem:[#allocation2 + $0x738] sm:$0xff]
    %v255 = vld [vmem:[#allocation2 + $0x740] sm:$0xff]
    %v256 = vld [vmem:[#allocation2 + $0x748] sm:$0xff]
    %v257 = vld [vmem:[#allocation2 + $0x750] sm:$0xff]
    %v258 = vld [vmem:[#allocation2 + $0x758] sm:$0xff]
    %v259 = vld [vmem:[#allocation2 + $0x760] sm:$0xff]
    %v260 = vld [vmem:[#allocation2 + $0x768] sm:$0xff]
    %v261 = vld [vmem:[#allocation2 + $0x770] sm:$0xff]
    %v262 = vld [vmem:[#allocation2 + $0x778] sm:$0xff]
    %v263 = vld [vmem:[#allocation2 + $0x780] sm:$0xff]
    %v264 = vld [vmem:[#allocation2 + $0x788] sm:$0xff]
    %v265 = vld [vmem:[#allocation2 + $0x790] sm:$0xff]
    %v266 = vld [vmem:[#allocation2 + $0x798] sm:$0xff]
    %v267 = vld [vmem:[#allocation2 + $0x7a0] sm:$0xff]
    %v268 = vld [vmem:[#allocation2 + $0x7a8] sm:$0xff]
    %v269 = vld [vmem:[#allocation2 + $0x7b0] sm:$0xff]
    %v270 = vld [vmem:[#allocation2 + $0x7b8] sm:$0xff]
    %v271 = vld [vmem:[#allocation2 + $0x7c0] sm:$0xff]
    %v272 = vld [vmem:[#allocation2 + $0x7c8] sm:$0xff]
    %v273 = vld [vmem:[#allocation2 + $0x7d0] sm:$0xff]
    %v274 = vld [vmem:[#allocation2 + $0x7d8] sm:$0xff]
    %v275 = vld [vmem:[#allocation2 + $0x7e0] sm:$0xff]
    %v276 = vld [vmem:[#allocation2 + $0x7e8] sm:$0xff]
    %v277 = vld [vmem:[#allocation2 + $0x7f0] sm:$0xff]
    %v278 = vld [vmem:[#allocation2 + $0x7f8] sm:$0xff]
    %v279 = vld [vmem:[#allocation2 + $0x800] sm:$0xff]
    %v280 = vld [vmem:[#allocation2 + $0x808] sm:$0xff]
    %v281 = vld [vmem:[#allocation2 + $0x810] sm:$0xff]
    %v282 = vld [vmem:[#allocation2 + $0x818] sm:$0xff]
    %v283 = vld [vmem:[#allocation2 + $0x820] sm:$0xff]
    %v284 = vld [vmem:[#allocation2 + $0x828] sm:$0xff]
    %v285 = vld [vmem:[#allocation2 + $0x830] sm:$0xff]
    %v286 = vld [vmem:[#allocation2 + $0x838] sm:$0xff]
    %v287 = vld [vmem:[#allocation2 + $0x840] sm:$0xff]
    %v288 = vld [vmem:[#allocation2 + $0x848] sm:$0xff]
    %v289 = vld [vmem:[#allocation2 + $0x850] sm:$0xff]
    %v290 = vld [vmem:[#allocation2 + $0x858] sm:$0xff]
    %v291 = vld [vmem:[#allocation2 + $0x860] sm:$0xff]
    %v292 = vld [vmem:[#allocation2 + $0x868] sm:$0xff]
    %v293 = vld [vmem:[#allocation2 + $0x870] sm:$0xff]
    %v294 = vld [vmem:[#allocation2 + $0x878] sm:$0xff]
    %v295 = vld [vmem:[#allocation2 + $0x880] sm:$0xff]
    %v296 = vld [vmem:[#allocation2 + $0x888] sm:$0xff]
    %v297 = vld [vmem:[#allocation2 + $0x890] sm:$0xff]
    %v298 = vld [vmem:[#allocation2 + $0x898] sm:$0xff]
    %v299 = vld [vmem:[#allocation2 + $0x8a0] sm:$0xff]
    %v300 = vld [vmem:[#allocation2 + $0x8a8] sm:$0xff]
    %v301 = vld [vmem:[#allocation2 + $0x8b0] sm:$0xff]
    %v302 = vld [vmem:[#allocation2 + $0x8b8] sm:$0xff]
    %v303 = vld [vmem:[#allocation2 + $0x8c0] sm:$0xff]
    %v304 = vld [vmem:[#allocation2 + $0x8c8] sm:$0xff]
    %v305 = vld [vmem:[#allocation2 + $0x8d0] sm:$0xff]
    %v306 = vld [vmem:[#allocation2 + $0x8d8] sm:$0xff]
    %v307 = vld [vmem:[#allocation2 + $0x8e0] sm:$0xff]
    %v308 = vld [vmem:[#allocation2 + $0x8e8] sm:$0xff]
    %v309 = vld [vmem:[#allocation2 + $0x8f0] sm:$0xff]
    %v310 = vld [vmem:[#allocation2 + $0x8f8] sm:$0xff]
    %v311 = vld [vmem:[#allocation2 + $0x900] sm:$0xff]
    %v312 = vld [vmem:[#allocation2 + $0x908] sm:$0xff]
    %v313 = vld [vmem:[#allocation2 + $0x910] sm:$0xff]
    %v314 = vld [vmem:[#allocation2 + $0x918] sm:$0xff]
    %v315 = vld [vmem:[#allocation2 + $0x920] sm:$0xff]
    %v316 = vld [vmem:[#allocation2 + $0x928] sm:$0xff]
    %v317 = vld [vmem:[#allocation2 + $0x930] sm:$0xff]
    %v318 = vld [vmem:[#allocation2 + $0x938] sm:$0xff]
    %v319 = vld [vmem:[#allocation2 + $0x940] sm:$0xff]
    %v320 = vld [vmem:[#allocation2 + $0x948] sm:$0xff]
    %v321 = vld [vmem:[#allocation2 + $0x950] sm:$0xff]
    %v322 = vld [vmem:[#allocation2 + $0x958] sm:$0xff]
    %v323 = vld [vmem:[#allocation2 + $0x960] sm:$0xff]
    %v324 = vld [vmem:[#allocation2 + $0x968] sm:$0xff]
    %v325 = vld [vmem:[#allocation2 + $0x970] sm:$0xff]
    %v326 = vld [vmem:[#allocation2 + $0x978] sm:$0xff]
    %v327 = vld [vmem:[#allocation2 + $0x980] sm:$0xff]
    %v328 = vld [vmem:[#allocation2 + $0x988] sm:$0xff]
    %v329 = vld [vmem:[#allocation2 + $0x990] sm:$0xff]
    %v330 = vld [vmem:[#allocation2 + $0x998] sm:$0xff]
    %v331 = vld [vmem:[#allocation2 + $0x9a0] sm:$0xff]
    %v332 = vld [vmem:[#allocation2 + $0x9a8] sm:$0xff]
    %v333 = vld [vmem:[#allocation2 + $0x9b0] sm:$0xff]
    %v334 = vld [vmem:[#allocation2 + $0x9b8] sm:$0xff]
    %v335 = vld [vmem:[#allocation2 + $0x9c0] sm:$0xff]
    %v336 = vld [vmem:[#allocation2 + $0x9c8] sm:$0xff]
    %v337 = vld [vmem:[#allocation2 + $0x9d0] sm:$0xff]
    %v338 = vld [vmem:[#allocation2 + $0x9d8] sm:$0xff]
    %v339 = vld [vmem:[#allocation2 + $0x9e0] sm:$0xff]
    %v340 = vld [vmem:[#allocation2 + $0x9e8] sm:$0xff]
    %v341 = vld [vmem:[#allocation2 + $0x9f0] sm:$0xff]
    %v342 = vld [vmem:[#allocation2 + $0x9f8] sm:$0xff]
    %v343 = vld [vmem:[#allocation2 + $0xa00] sm:$0xff]
    %v344 = vld [vmem:[#allocation2 + $0xa08] sm:$0xff]
    %v345 = vld [vmem:[#allocation2 + $0xa10] sm:$0xff]
    %v346 = vld [vmem:[#allocation2 + $0xa18] sm:$0xff]
    %v347 = vld [vmem:[#allocation2 + $0xa20] sm:$0xff]
    %v348 = vld [vmem:[#allocation2 + $0xa28] sm:$0xff]
    %v349 = vld [vmem:[#allocation2 + $0xa30] sm:$0xff]
    %v350 = vld [vmem:[#allocation2 + $0xa38] sm:$0xff]
    %v351 = vld [vmem:[#allocation2 + $0xa40] sm:$0xff]
    %v352 = vld [vmem:[#allocation2 + $0xa48] sm:$0xff]
    %v353 = vld [vmem:[#allocation2 + $0xa50] sm:$0xff]
    %v354 = vld [vmem:[#allocation2 + $0xa58] sm:$0xff]
    %v355 = vld [vmem:[#allocation2 + $0xa60] sm:$0xff]
    %v356 = vld [vmem:[#allocation2 + $0xa68] sm:$0xff]
    %v357 = vld [vmem:[#allocation2 + $0xa70] sm:$0xff]
    %v358 = vld [vmem:[#allocation2 + $0xa78] sm:$0xff]
    %v359 = vld [vmem:[#allocation2 + $0xa80] sm:$0xff]
    %v360 = vld [vmem:[#allocation2 + $0xa88] sm:$0xff]
    %v361 = vld [vmem:[#allocation2 + $0xa90] sm:$0xff]
    %v362 = vld [vmem:[#allocation2 + $0xa98] sm:$0xff]
    %v363 = vld [vmem:[#allocation2 + $0xaa0] sm:$0xff]
    %v364 = vld [vmem:[#allocation2 + $0xaa8] sm:$0xff]
    %v365 = vld [vmem:[#allocation2 + $0xab0] sm:$0xff]
    %v366 = vld [vmem:[#allocation2 + $0xab8] sm:$0xff]
    %v367 = vld [vmem:[#allocation2 + $0xac0] sm:$0xff]
    %v368 = vld [vmem:[#allocation2 + $0xac8] sm:$0xff]
    %v369 = vld [vmem:[#allocation2 + $0xad0] sm:$0xff]
    %v370 = vld [vmem:[#allocation2 + $0xad8] sm:$0xff]
    %v371 = vld [vmem:[#allocation2 + $0xae0] sm:$0xff]
    %v372 = vld [vmem:[#allocation2 + $0xae8] sm:$0xff]
    %v373 = vld [vmem:[#allocation2 + $0xaf0] sm:$0xff]
    %v374 = vld [vmem:[#allocation2 + $0xaf8] sm:$0xff]
    %v375 = vld [vmem:[#allocation2 + $0xb00] sm:$0xff]
    %v376 = vld [vmem:[#allocation2 + $0xb08] sm:$0xff]
    %v377 = vld [vmem:[#allocation2 + $0xb10] sm:$0xff]
    %v378 = vld [vmem:[#allocation2 + $0xb18] sm:$0xff]
    %v379 = vld [vmem:[#allocation2 + $0xb20] sm:$0xff]
    %v380 = vld [vmem:[#allocation2 + $0xb28] sm:$0xff]
    %v381 = vld [vmem:[#allocation2 + $0xb30] sm:$0xff]
    %v382 = vld [vmem:[#allocation2 + $0xb38] sm:$0xff]
    %v383 = vld [vmem:[#allocation2 + $0xb40] sm:$0xff]
    %v384 = vld [vmem:[#allocation2 + $0xb48] sm:$0xff]
    %v385 = vld [vmem:[#allocation2 + $0xb50] sm:$0xff]
    %v386 = vld [vmem:[#allocation2 + $0xb58] sm:$0xff]
    %v387 = vld [vmem:[#allocation2 + $0xb60] sm:$0xff]
    %v388 = vld [vmem:[#allocation2 + $0xb68] sm:$0xff]
    %v389 = vld [vmem:[#allocation2 + $0xb70] sm:$0xff]
    %v390 = vld [vmem:[#allocation2 + $0xb78] sm:$0xff]
    %v391 = vld [vmem:[#allocation2 + $0xb80] sm:$0xff]
    %v392 = vld [vmem:[#allocation2 + $0xb88] sm:$0xff]
    %v393 = vld [vmem:[#allocation2 + $0xb90] sm:$0xff]
    %v394 = vld [vmem:[#allocation2 + $0xb98] sm:$0xff]
    %v395 = vld [vmem:[#allocation2 + $0xba0] sm:$0xff]
    %v396 = vld [vmem:[#allocation2 + $0xba8] sm:$0xff]
    %v397 = vld [vmem:[#allocation2 + $0xbb0] sm:$0xff]
    %v398 = vld [vmem:[#allocation2 + $0xbb8] sm:$0xff]
    %v399 = vld [vmem:[#allocation2 + $0xbc0] sm:$0xff]
    %v400 = vld [vmem:[#allocation2 + $0xbc8] sm:$0xff]
    %v401 = vld [vmem:[#allocation2 + $0xbd0] sm:$0xff]
    %v402 = vld [vmem:[#allocation2 + $0xbd8] sm:$0xff]
    %v403 = vld [vmem:[#allocation2 + $0xbe0] sm:$0xff]
    %v404 = vld [vmem:[#allocation2 + $0xbe8] sm:$0xff]
    %v405 = vld [vmem:[#allocation2 + $0xbf0] sm:$0xff]
    %v406 = vld [vmem:[#allocation2 + $0xbf8] sm:$0xff]
    %v407 = vadd.f32 %v23, %v24
    %v408 = vadd.f32 %v407, %v25
    %v409 = vadd.f32 %v408, %v26
    %v410 = vadd.f32 %v409, %v27
    %v411 = vadd.f32 %v410, %v28
    %v412 = vadd.f32 %v411, %v29
    %v413 = vadd.f32 %v412, %v30
    %v414 = vadd.f32 %v413, %v31
    %v415 = vadd.f32 %v414, %v32
    %v416 = vadd.f32 %v415, %v33
    %v417 = vadd.f32 %v416, %v34
    %v418 = vadd.f32 %v417, %v35
    %v419 = vadd.f32 %v418, %v36
    %v420 = vadd.f32 %v419, %v37
    %v421 = vadd.f32 %v420, %v38
    %v422 = vadd.f32 %v421, %v39
    %v423 = vadd.f32 %v422, %v40
    %v424 = vadd.f32 %v423, %v41
    %v425 = vadd.f32 %v424, %v42
    %v426 = vadd.f32 %v425, %v43
    %v427 = vadd.f32 %v426, %v44
    %v428 = vadd.f32 %v427, %v45
    %v429 = vadd.f32 %v428, %v46
    %v430 = vadd.f32 %v429, %v47
    %v431 = vadd.f32 %v430, %v48
    %v432 = vadd.f32 %v431, %v49
    %v433 = vadd.f32 %v432, %v50
    %v434 = vadd.f32 %v433, %v51
    %v435 = vadd.f32 %v434, %v52
    %v436 = vadd.f32 %v435, %v53
    %v437 = vadd.f32 %v436, %v54
    %v438 = vadd.f32 %v437, %v55
    %v439 = vadd.f32 %v438, %v56
    %v440 = vadd.f32 %v439, %v57
    %v441 = vadd.f32 %v440, %v58
    %v442 = vadd.f32 %v441, %v59
    %v443 = vadd.f32 %v442, %v60
    %v444 = vadd.f32 %v443, %v61
    %v445 = vadd.f32 %v444, %v62
    %v446 = vadd.f32 %v445, %v63
    %v447 = vadd.f32 %v446, %v64
    %v448 = vadd.f32 %v447, %v65
    %v449 = vadd.f32 %v448, %v66
    %v450 = vadd.f32 %v449, %v67
    %v451 = vadd.f32 %v450, %v68
    %v452 = vadd.f32 %v451, %v69
    %v453 = vadd.f32 %v452, %v70
    %v454 = vadd.f32 %v453, %v71
    %v455 = vadd.f32 %v454, %v72
    %v456 = vadd.f32 %v455, %v73
    %v457 = vadd.f32 %v456, %v74
    %v458 = vadd.f32 %v457, %v75
    %v459 = vadd.f32 %v458, %v76
    %v460 = vadd.f32 %v459, %v77
    %v461 = vadd.f32 %v460, %v78
    %v462 = vadd.f32 %v461, %v79
    %v463 = vadd.f32 %v462, %v80
    %v464 = vadd.f32 %v463, %v81
    %v465 = vadd.f32 %v464, %v82
    %v466 = vadd.f32 %v465, %v83
    %v467 = vadd.f32 %v466, %v84
    %v468 = vadd.f32 %v467, %v85
    %v469 = vadd.f32 %v468, %v86
    %v470 = vadd.f32 %v469, %v87
    %v471 = vadd.f32 %v470, %v88
    %v472 = vadd.f32 %v471, %v89
    %v473 = vadd.f32 %v472, %v90
    %v474 = vadd.f32 %v473, %v91
    %v475 = vadd.f32 %v474, %v92
    %v476 = vadd.f32 %v475, %v93
    %v477 = vadd.f32 %v476, %v94
    %v478 = vadd.f32 %v477, %v95
    %v479 = vadd.f32 %v478, %v96
    %v480 = vadd.f32 %v479, %v97
    %v481 = vadd.f32 %v480, %v98
    %v482 = vadd.f32 %v481, %v99
    %v483 = vadd.f32 %v482, %v100
    %v484 = vadd.f32 %v483, %v101
    %v485 = vadd.f32 %v484, %v102
    %v486 = vadd.f32 %v485, %v103
    %v487 = vadd.f32 %v486, %v104
    %v488 = vadd.f32 %v487, %v105
    %v489 = vadd.f32 %v488, %v106
    %v490 = vadd.f32 %v489, %v107
    %v491 = vadd.f32 %v490, %v108
    %v492 = vadd.f32 %v491, %v109
    %v493 = vadd.f32 %v492, %v110
    %v494 = vadd.f32 %v493, %v111
    %v495 = vadd.f32 %v494, %v112
    %v496 = vadd.f32 %v495, %v113
    %v497 = vadd.f32 %v496, %v114
    %v498 = vadd.f32 %v497, %v115
    %v499 = vadd.f32 %v498, %v116
    %v500 = vadd.f32 %v499, %v117
    %v501 = vadd.f32 %v500, %v118
    %v502 = vadd.f32 %v501, %v119
    %v503 = vadd.f32 %v502, %v120
    %v504 = vadd.f32 %v503, %v121
    %v505 = vadd.f32 %v504, %v122
    %v506 = vadd.f32 %v505, %v123
    %v507 = vadd.f32 %v506, %v124
    %v508 = vadd.f32 %v507, %v125
    %v509 = vadd.f32 %v508, %v126
    %v510 = vadd.f32 %v509, %v127
    %v511 = vadd.f32 %v510, %v128
    %v512 = vadd.f32 %v511, %v129
    %v513 = vadd.f32 %v512, %v130
    %v514 = vadd.f32 %v513, %v131
    %v515 = vadd.f32 %v514, %v132
    %v516 = vadd.f32 %v515, %v133
    %v517 = vadd.f32 %v516, %v134
    %v518 = vadd.f32 %v517, %v135
    %v519 = vadd.f32 %v518, %v136
    %v520 = vadd.f32 %v519, %v137
    %v521 = vadd.f32 %v520, %v138
    %v522 = vadd.f32 %v521, %v139
    %v523 = vadd.f32 %v522, %v140
    %v524 = vadd.f32 %v523, %v141
    %v525 = vadd.f32 %v524, %v142
    %v526 = vadd.f32 %v525, %v143
    %v527 = vadd.f32 %v526, %v144
    %v528 = vadd.f32 %v527, %v145
    %v529 = vadd.f32 %v528, %v146
    %v530 = vadd.f32 %v529, %v147
    %v531 = vadd.f32 %v530, %v148
    %v532 = vadd.f32 %v531, %v149
    %v533 = vadd.f32 %v532, %v150
    %v534 = vadd.f32 %v533, %v151
    %v535 = vadd.f32 %v534, %v152
    %v536 = vadd.f32 %v535, %v153
    %v537 = vadd.f32 %v536, %v154
    %v538 = vadd.f32 %v537, %v155
    %v539 = vadd.f32 %v538, %v156
    %v540 = vadd.f32 %v539, %v157
    %v541 = vadd.f32 %v540, %v158
    %v542 = vadd.f32 %v541, %v159
    %v543 = vadd.f32 %v542, %v160
    %v544 = vadd.f32 %v543, %v161
    %v545 = vadd.f32 %v544, %v162
    %v546 = vadd.f32 %v545, %v163
    %v547 = vadd.f32 %v546, %v164
    %v548 = vadd.f32 %v547, %v165
    %v549 = vadd.f32 %v548, %v166
    %v550 = vadd.f32 %v549, %v167
    %v551 = vadd.f32 %v550, %v168
    %v552 = vadd.f32 %v551, %v169
    %v553 = vadd.f32 %v552, %v170
    %v554 = vadd.f32 %v553, %v171
    %v555 = vadd.f32 %v554, %v172
    %v556 = vadd.f32 %v555, %v173
    %v557 = vadd.f32 %v556, %v174
    %v558 = vadd.f32 %v557, %v175
    %v559 = vadd.f32 %v558, %v176
    %v560 = vadd.f32 %v559, %v177
    %v561 = vadd.f32 %v560, %v178
    %v562 = vadd.f32 %v561, %v179
    %v563 = vadd.f32 %v562, %v180
    %v564 = vadd.f32 %v563, %v181
    %v565 = vadd.f32 %v564, %v182
    %v566 = vadd.f32 %v565, %v183
    %v567 = vadd.f32 %v566, %v184
    %v568 = vadd.f32 %v567, %v185
    %v569 = vadd.f32 %v568, %v186
    %v570 = vadd.f32 %v569, %v187
    %v571 = vadd.f32 %v570, %v188
    %v572 = vadd.f32 %v571, %v189
    %v573 = vadd.f32 %v572, %v190
    %v574 = vadd.f32 %v573, %v191
    %v575 = vadd.f32 %v574, %v192
    %v576 = vadd.f32 %v575, %v193
    %v577 = vadd.f32 %v576, %v194
    %v578 = vadd.f32 %v577, %v195
    %v579 = vadd.f32 %v578, %v196
    %v580 = vadd.f32 %v579, %v197
    %v581 = vadd.f32 %v580, %v198
    %v582 = vadd.f32 %v581, %v199
    %v583 = vadd.f32 %v582, %v200
    %v584 = vadd.f32 %v583, %v201
    %v585 = vadd.f32 %v584, %v202
    %v586 = vadd.f32 %v585, %v203
    %v587 = vadd.f32 %v586, %v204
    %v588 = vadd.f32 %v587, %v205
    %v589 = vadd.f32 %v588, %v206
    %v590 = vadd.f32 %v589, %v207
    %v591 = vadd.f32 %v590, %v208
    %v592 = vadd.f32 %v591, %v209
    %v593 = vadd.f32 %v592, %v210
    %v594 = vadd.f32 %v593, %v211
    %v595 = vadd.f32 %v594, %v212
    %v596 = vadd.f32 %v595, %v213
    %v597 = vadd.f32 %v596, %v214
    %v598 = vadd.f32 %v597, %v215
    %v599 = vadd.f32 %v598, %v216
    %v600 = vadd.f32 %v599, %v217
    %v601 = vadd.f32 %v600, %v218
    %v602 = vadd.f32 %v601, %v219
    %v603 = vadd.f32 %v602, %v220
    %v604 = vadd.f32 %v603, %v221
    %v605 = vadd.f32 %v604, %v222
    %v606 = vadd.f32 %v605, %v223
    %v607 = vadd.f32 %v606, %v224
    %v608 = vadd.f32 %v607, %v225
    %v609 = vadd.f32 %v608, %v226
    %v610 = vadd.f32 %v609, %v227
    %v611 = vadd.f32 %v610, %v228
    %v612 = vadd.f32 %v611, %v229
    %v613 = vadd.f32 %v612, %v230
    %v614 = vadd.f32 %v613, %v231
    %v615 = vadd.f32 %v614, %v232
    %v616 = vadd.f32 %v615, %v233
    %v617 = vadd.f32 %v616, %v234
    %v618 = vadd.f32 %v617, %v235
    %v619 = vadd.f32 %v618, %v236
    %v620 = vadd.f32 %v619, %v237
    %v621 = vadd.f32 %v620, %v238
    %v622 = vadd.f32 %v621, %v239
    %v623 = vadd.f32 %v622, %v240
    %v624 = vadd.f32 %v623, %v241
    %v625 = vadd.f32 %v624, %v242
    %v626 = vadd.f32 %v625, %v243
    %v627 = vadd.f32 %v626, %v244
    %v628 = vadd.f32 %v627, %v245
    %v629 = vadd.f32 %v628, %v246
    %v630 = vadd.f32 %v629, %v247
    %v631 = vadd.f32 %v630, %v248
    %v632 = vadd.f32 %v631, %v249
    %v633 = vadd.f32 %v632, %v250
    %v634 = vadd.f32 %v633, %v251
    %v635 = vadd.f32 %v634, %v252
    %v636 = vadd.f32 %v635, %v253
    %v637 = vadd.f32 %v636, %v254
    %v638 = vadd.f32 %v637, %v255
    %v639 = vadd.f32 %v638, %v256
    %v640 = vadd.f32 %v639, %v257
    %v641 = vadd.f32 %v640, %v258
    %v642 = vadd.f32 %v641, %v259
    %v643 = vadd.f32 %v642, %v260
    %v644 = vadd.f32 %v643, %v261
    %v645 = vadd.f32 %v644, %v262
    %v646 = vadd.f32 %v645, %v263
    %v647 = vadd.f32 %v646, %v264
    %v648 = vadd.f32 %v647, %v265
    %v649 = vadd.f32 %v648, %v266
    %v650 = vadd.f32 %v649, %v267
    %v651 = vadd.f32 %v650, %v268
    %v652 = vadd.f32 %v651, %v269
    %v653 = vadd.f32 %v652, %v270
    %v654 = vadd.f32 %v653, %v271
    %v655 = vadd.f32 %v654, %v272
    %v656 = vadd.f32 %v655, %v273
    %v657 = vadd.f32 %v656, %v274
    %v658 = vadd.f32 %v657, %v275
    %v659 = vadd.f32 %v658, %v276
    %v660 = vadd.f32 %v659, %v277
    %v661 = vadd.f32 %v660, %v278
    %v662 = vadd.f32 %v661, %v279
    %v663 = vadd.f32 %v662, %v280
    %v664 = vadd.f32 %v663, %v281
    %v665 = vadd.f32 %v664, %v282
    %v666 = vadd.f32 %v665, %v283
    %v667 = vadd.f32 %v666, %v284
    %v668 = vadd.f32 %v667, %v285
    %v669 = vadd.f32 %v668, %v286
    %v670 = vadd.f32 %v669, %v287
    %v671 = vadd.f32 %v670, %v288
    %v672 = vadd.f32 %v671, %v289
    %v673 = vadd.f32 %v672, %v290
    %v674 = vadd.f32 %v673, %v291
    %v675 = vadd.f32 %v674, %v292
    %v676 = vadd.f32 %v675, %v293
    %v677 = vadd.f32 %v676, %v294
    %v678 = vadd.f32 %v677, %v295
    %v679 = vadd.f32 %v678, %v296
    %v680 = vadd.f32 %v679, %v297
    %v681 = vadd.f32 %v680, %v298
    %v682 = vadd.f32 %v681, %v299
    %v683 = vadd.f32 %v682, %v300
    %v684 = vadd.f32 %v683, %v301
    %v685 = vadd.f32 %v684, %v302
    %v686 = vadd.f32 %v685, %v303
    %v687 = vadd.f32 %v686, %v304
    %v688 = vadd.f32 %v687, %v305
    %v689 = vadd.f32 %v688, %v306
    %v690 = vadd.f32 %v689, %v307
    %v691 = vadd.f32 %v690, %v308
    %v692 = vadd.f32 %v691, %v309
    %v693 = vadd.f32 %v692, %v310
    %v694 = vadd.f32 %v693, %v311
    %v695 = vadd.f32 %v694, %v312
    %v696 = vadd.f32 %v695, %v313
    %v697 = vadd.f32 %v696, %v314
    %v698 = vadd.f32 %v697, %v315
    %v699 = vadd.f32 %v698, %v316
    %v700 = vadd.f32 %v699, %v317
    %v701 = vadd.f32 %v700, %v318
    %v702 = vadd.f32 %v701, %v319
    %v703 = vadd.f32 %v702, %v320
    %v704 = vadd.f32 %v703, %v321
    %v705 = vadd.f32 %v704, %v322
    %v706 = vadd.f32 %v705, %v323
    %v707 = vadd.f32 %v706, %v324
    %v708 = vadd.f32 %v707, %v325
    %v709 = vadd.f32 %v708, %v326
    %v710 = vadd.f32 %v709, %v327
    %v711 = vadd.f32 %v710, %v328
    %v712 = vadd.f32 %v711, %v329
    %v713 = vadd.f32 %v712, %v330
    %v714 = vadd.f32 %v713, %v331
    %v715 = vadd.f32 %v714, %v332
    %v716 = vadd.f32 %v715, %v333
    %v717 = vadd.f32 %v716, %v334
    %v718 = vadd.f32 %v717, %v335
    %v719 = vadd.f32 %v718, %v336
    %v720 = vadd.f32 %v719, %v337
    %v721 = vadd.f32 %v720, %v338
    %v722 = vadd.f32 %v721, %v339
    %v723 = vadd.f32 %v722, %v340
    %v724 = vadd.f32 %v723, %v341
    %v725 = vadd.f32 %v724, %v342
    %v726 = vadd.f32 %v725, %v343
    %v727 = vadd.f32 %v726, %v344
    %v728 = vadd.f32 %v727, %v345
    %v729 = vadd.f32 %v728, %v346
    %v730 = vadd.f32 %v729, %v347
    %v731 = vadd.f32 %v730, %v348
    %v732 = vadd.f32 %v731, %v349
    %v733 = vadd.f32 %v732, %v350
    %v734 = vadd.f32 %v733, %v351
    %v735 = vadd.f32 %v734, %v352
    %v736 = vadd.f32 %v735, %v353
    %v737 = vadd.f32 %v736, %v354
    %v738 = vadd.f32 %v737, %v355
    %v739 = vadd.f32 %v738, %v356
    %v740 = vadd.f32 %v739, %v357
    %v741 = vadd.f32 %v740, %v358
    %v742 = vadd.f32 %v741, %v359
    %v743 = vadd.f32 %v742, %v360
    %v744 = vadd.f32 %v743, %v361
    %v745 = vadd.f32 %v744, %v362
    %v746 = vadd.f32 %v745, %v363
    %v747 = vadd.f32 %v746, %v364
    %v748 = vadd.f32 %v747, %v365
    %v749 = vadd.f32 %v748, %v366
    %v750 = vadd.f32 %v749, %v367
    %v751 = vadd.f32 %v750, %v368
    %v752 = vadd.f32 %v751, %v369
    %v753 = vadd.f32 %v752, %v370
    %v754 = vadd.f32 %v753, %v371
    %v755 = vadd.f32 %v754, %v372
    %v756 = vadd.f32 %v755, %v373
    %v757 = vadd.f32 %v756, %v374
    %v758 = vadd.f32 %v757, %v375
    %v759 = vadd.f32 %v758, %v376
    %v760 = vadd.f32 %v759, %v377
    %v761 = vadd.f32 %v760, %v378
    %v762 = vadd.f32 %v761, %v379
    %v763 = vadd.f32 %v762, %v380
    %v764 = vadd.f32 %v763, %v381
    %v765 = vadd.f32 %v764, %v382
    %v766 = vadd.f32 %v765, %v383
    %v767 = vadd.f32 %v766, %v384
    %v768 = vadd.f32 %v767, %v385
    %v769 = vadd.f32 %v768, %v386
    %v770 = vadd.f32 %v769, %v387
    %v771 = vadd.f32 %v770, %v388
    %v772 = vadd.f32 %v771, %v389
    %v773 = vadd.f32 %v772, %v390
    %v774 = vadd.f32 %v773, %v391
    %v775 = vadd.f32 %v774, %v392
    %v776 = vadd.f32 %v775, %v393
    %v777 = vadd.f32 %v776, %v394
    %v778 = vadd.f32 %v777, %v395
    %v779 = vadd.f32 %v778, %v396
    %v780 = vadd.f32 %v779, %v397
    %v781 = vadd.f32 %v780, %v398
    %v782 = vadd.f32 %v781, %v399
    %v783 = vadd.f32 %v782, %v400
    %v784 = vadd.f32 %v783, %v401
    %v785 = vadd.f32 %v784, %v402
    %v786 = vadd.f32 %v785, %v403
    %v787 = vadd.f32 %v786, %v404
    %v788 = vadd.f32 %v787, %v405
    %v789 = vadd.f32 %v788, %v406
    %790 = vadd.xlane.f32.xlu0 %v789
    %v791 = vpop.xlane.xlu0 %790
    %v792 = vrot.slane %v791, 4
    %v793 = vadd.f32 %v791, %v792
    %v794 = vrot.slane %v793, 2
    %v795 = vadd.f32 %v793, %v794
    %v796 = vrot.slane %v795, 1
    %v797 = vadd.f32 %v795, %v796
    %s798 = vtos %v797
    %v799 = vstv %s798
    %vm800 = vcmask 0
    %801 = vst.msk [vmem:[#allocation5] sm:$0x1] %vm800, %v799
    // Predicated region
    $region10: #{tpu_custom_call.1} parent=1 // pred_check
      _
    $region11: #{tpu_custom_call.1} parent=1 // pred_check_branch
      %803 = sbr.rel (0) target = $region13
    $region12: #{tpu_custom_call.1} parent=1 // pred_region
      %s805 = ssub.s32 16, 16
      %806 = vsyncadd [#allocation4], %s805
      %s808 = sshll.u32 [#allocation5], 4
      %s809 = int_to_ptr.vmem [resolvable:$true] %s808
      %811 = dma.vmem_to_hbm [thread:$0]  %s809, 16, %s1, [#allocation4]
    $region13: #{tpu_custom_call.1} parent=1 // pred_fallthru
      _
    // Predicated region
    $region14: #{tpu_custom_call.1} parent=1 // pred_check
      _
    $region15: #{tpu_custom_call.1} parent=1 // pred_check_branch
      %813 = sbr.rel (0) target = $region17
    $region16: #{tpu_custom_call.1} parent=1 // pred_region
      %814 = dma.done [#allocation4], 16
    $region17: #{tpu_custom_call.1} parent=1 // pred_fallthru
      _
    %815 = vsyncpa [#allocation3], 1
    %816 = vsyncpa [#allocation4], 1

</llo_original>
